<compile_context>
chip_gen: v6e
topology: v6e:2x2x1
jax: 0.10.0
libtpu: 0.0.40
codegen_flags: <defaults>
</compile_context>

<pallas_src>
import jax
import jax.numpy as jnp
from jax.experimental import pallas as pl
from jax.experimental.pallas import tpu as pltpu

LANES = 128


def ne_conv_kernel(nn_ref, na_ref, w_ref, b_ref, o_ref):
    # nn_ref: (f_nn, TR, 128) VMEM   batch-on-(sublanes x lanes) feature planes
    # na_ref: (f_na, TR, 128) VMEM
    # w_ref : (out_f * in_f,) SMEM   row-major flatten of nn.Linear's (out, in) W
    # b_ref : (out_f,)        SMEM
    # o_ref : (out_f, TR, 128) VMEM
    f_nn = nn_ref.shape[0]
    f_na = na_ref.shape[0]
    out_f = o_ref.shape[0]
    in_f = f_nn + f_na
    plane = o_ref.shape[1:]  # (TR, 128) — fully dense vreg tiles

    # Load each feature plane once; upcast to f32 on load (bf16 inputs OK).
    nn_p = [nn_ref[k].astype(jnp.float32) for k in range(f_nn)]
    na_p = [na_ref[k].astype(jnp.float32) for k in range(f_na)]

    # y_j = b_j + sum_k W[j, k] * x_k   (x = [nn | na], never concatenated)
    # Pure VPU scalar-splat FMAs over dense planes; tiny static trip counts,
    # fully unrolled.
    for j in range(out_f):
        acc = jnp.full(plane, b_ref[j], dtype=jnp.float32)
        for k in range(f_nn):
            acc = acc + w_ref[j * in_f + k] * nn_p[k]
        for k in range(f_na):
            acc = acc + w_ref[j * in_f + f_nn + k] * na_p[k]
        o_ref[j, :, :] = acc  # dense (TR, 128) store, no lane masking


def _to_planes(x, R):
    """(B, f) -> (f, R, 128): batch spread over sublanes x lanes, zero-padded."""
    B, f = x.shape
    xp = jnp.pad(x, ((0, R * LANES - B), (0, 0)))
    return xp.T.reshape(f, R, LANES)


def _pick_row_tile(R):
    # TR=512 sublane rows => 512*128 = 65536 batch rows per step:
    #   HBM/step ~1.5 MB (2x 512KB reads + 512KB write) amortizes the ~0.35us
    #   per-step cost; double-buffered VMEM ~3 MB fits every generation.
    TR_MAX = 512
    return R if R <= TR_MAX else TR_MAX


def ne_conv_net(nearest_neibours, Na_data, weight, bias, *,
                use_kernel=None, row_tile=None):
    """weight: (2, 4) as in nn.Linear (out, in); bias: (2,).
    Column order of `weight` must match the [nearest_neibours | Na_data] concat."""
    B, f_nn = nearest_neibours.shape
    B2, f_na = Na_data.shape
    out_f, in_f = weight.shape
    assert B == B2
    assert in_f == f_nn + f_na, "weight columns must split as [nn | na]"

    if use_kernel is None:
        use_kernel = B >= 4096  # tiny batches: let XLA fuse the ~16-FLOP/row affine
    if not use_kernel:
        x = jnp.concatenate([nearest_neibours, Na_data], axis=1).astype(jnp.float32)
        return x @ weight.astype(jnp.float32).T + bias.astype(jnp.float32)

    R = pl.cdiv(B, LANES)                       # sublane rows of the batch planes
    tr = row_tile if row_tile is not None else _pick_row_tile(R)
    grid = (pl.cdiv(R, tr),)                    # ragged last block is masked

    nn_planes = _to_planes(nearest_neibours, R)  # (f_nn, R, 128)
    na_planes = _to_planes(Na_data, R)           # (f_na, R, 128)
    w_flat = weight.reshape(-1).astype(jnp.float32)   # (out*in,) SMEM scalars
    b_flat = bias.reshape(-1).astype(jnp.float32)     # (out,)    SMEM scalars

    out_planes = pl.pallas_call(
        ne_conv_kernel,
        out_shape=jax.ShapeDtypeStruct((out_f, R, LANES), jnp.float32),
        grid=grid,
        in_specs=[
            pl.BlockSpec((f_nn, tr, LANES), lambda i: (0, i, 0)),
            pl.BlockSpec((f_na, tr, LANES), lambda i: (0, i, 0)),
            pl.BlockSpec(memory_space=pltpu.MemorySpace.SMEM),  # weights
            pl.BlockSpec(memory_space=pltpu.MemorySpace.SMEM),  # bias
        ],
        out_specs=pl.BlockSpec((out_f, tr, LANES), lambda i: (0, i, 0)),
        compiler_params=pltpu.CompilerParams(
            dimension_semantics=("parallel",)),
    )(nn_planes, na_planes, w_flat, b_flat)

    # (out_f, R, 128) -> (B, out_f), dropping batch padding.
    return out_planes.reshape(out_f, R * LANES).T[:B]


if __name__ == "__main__":
    key = jax.random.PRNGKey(0)
    k_nn, k_na, k_w, k_b = jax.random.split(key, 4)

    input_vector_size = 4          # concatenated feature size fed to fc
    f_nn, f_na = 2, 2              # split: nearest_neibours (B,2), Na_data (B,2)

    # Deterministic nn.Linear(4, 2)-shaped parameters (synthetic init).
    weight = jax.random.normal(k_w, (2, input_vector_size), dtype=jnp.float32) * 0.5
    bias = jax.random.normal(k_b, (2,), dtype=jnp.float32) * 0.1

    def ref(nn_x, na_x):
        # Pure-JAX reference (same semantics as the PyTorch forward, in f32).
        return jnp.concatenate([nn_x, na_x], axis=1) @ weight.T + bias

    # 1) Small batch: single full-extent block.
    B = 8
    nn_x = jax.random.normal(k_nn, (B, f_nn), dtype=jnp.float32)
    na_x = jax.random.normal(k_na, (B, f_na), dtype=jnp.float32)
    out = jax.block_until_ready(
        ne_conv_net(nn_x, na_x, weight, bias, use_kernel=True))
    assert out.shape == (B, 2)
    assert jnp.allclose(out, ref(nn_x, na_x), atol=1e-5, rtol=1e-5)

    # 2) Batch exercising the cdiv grid with a ragged (masked) last block:
    #    B=1200 -> R=10 sublane rows, row_tile=8 -> grid of 2 steps.
    B = 1200
    nn_x = jax.random.normal(k_nn, (B, f_nn), dtype=jnp.float32)
    na_x = jax.random.normal(k_na, (B, f_na), dtype=jnp.float32)
    out = jax.block_until_ready(
        ne_conv_net(nn_x, na_x, weight, bias, use_kernel=True, row_tile=8))
    assert out.shape == (B, 2)
    assert jnp.allclose(out, ref(nn_x, na_x), atol=1e-5, rtol=1e-5)

    print("KERNEL_OK")
</pallas_src>

<mosaic_0001>
module attributes {stable_mosaic.version = 11 : i64} {
  func.func @ne_conv_kernel(%arg0: i32, %arg1: memref<2x1x128xf32, #tpu.memory_space<vmem>>, %arg2: memref<2x1x128xf32, #tpu.memory_space<vmem>>, %arg3: memref<8xf32, #tpu.memory_space<smem>>, %arg4: memref<2xf32, #tpu.memory_space<smem>>, %arg5: memref<2x1x128xf32, #tpu.memory_space<vmem>>) attributes {dimension_semantics = [#tpu.dimension_semantics<parallel>], iteration_bounds = array<i64: 1>, scalar_prefetch = 0 : i64, scratch_operands = 0 : i64, tpu.core_type = #tpu.core_type<tc>, window_params = [{transform_indices = @transform_0, window_bounds = array<i64: 2, 1, 128>}, {transform_indices = @transform_1, window_bounds = array<i64: 2, 1, 128>}, {transform_indices = @transform_2, window_bounds = array<i64: 8>}, {transform_indices = @transform_3, window_bounds = array<i64: 2>}, {transform_indices = @transform_4, window_bounds = array<i64: 2, 1, 128>}]} {
    %c0 = arith.constant 0 : index
    %c0_0 = arith.constant 0 : index
    %c0_1 = arith.constant 0 : index
    %0 = vector.load %arg1[%c0, %c0_0, %c0_1] : memref<2x1x128xf32, #tpu.memory_space<vmem>>, vector<1x1x128xf32>
    %1 = vector.shape_cast %0 : vector<1x1x128xf32> to vector<1x128xf32>
    %c1 = arith.constant 1 : index
    %c0_2 = arith.constant 0 : index
    %c0_3 = arith.constant 0 : index
    %2 = vector.load %arg1[%c1, %c0_2, %c0_3] : memref<2x1x128xf32, #tpu.memory_space<vmem>>, vector<1x1x128xf32>
    %3 = vector.shape_cast %2 : vector<1x1x128xf32> to vector<1x128xf32>
    %c0_4 = arith.constant 0 : index
    %c0_5 = arith.constant 0 : index
    %c0_6 = arith.constant 0 : index
    %4 = vector.load %arg2[%c0_4, %c0_5, %c0_6] : memref<2x1x128xf32, #tpu.memory_space<vmem>>, vector<1x1x128xf32>
    %5 = vector.shape_cast %4 : vector<1x1x128xf32> to vector<1x128xf32>
    %c1_7 = arith.constant 1 : index
    %c0_8 = arith.constant 0 : index
    %c0_9 = arith.constant 0 : index
    %6 = vector.load %arg2[%c1_7, %c0_8, %c0_9] : memref<2x1x128xf32, #tpu.memory_space<vmem>>, vector<1x1x128xf32>
    %7 = vector.shape_cast %6 : vector<1x1x128xf32> to vector<1x128xf32>
    %c0_10 = arith.constant 0 : index
    %8 = memref.load %arg4[%c0_10] : memref<2xf32, #tpu.memory_space<smem>>
    %9 = vector.broadcast %8 : f32 to vector<1x128xf32>
    %c0_11 = arith.constant 0 : index
    %10 = memref.load %arg3[%c0_11] : memref<8xf32, #tpu.memory_space<smem>>
    %11 = vector.broadcast %10 : f32 to vector<1x128xf32>
    %12 = arith.mulf %11, %1 : vector<1x128xf32>
    %13 = arith.addf %9, %12 : vector<1x128xf32>
    %c1_12 = arith.constant 1 : index
    %14 = memref.load %arg3[%c1_12] : memref<8xf32, #tpu.memory_space<smem>>
    %15 = vector.broadcast %14 : f32 to vector<1x128xf32>
    %16 = arith.mulf %15, %3 : vector<1x128xf32>
    %17 = arith.addf %13, %16 : vector<1x128xf32>
    %c2 = arith.constant 2 : index
    %18 = memref.load %arg3[%c2] : memref<8xf32, #tpu.memory_space<smem>>
    %19 = vector.broadcast %18 : f32 to vector<1x128xf32>
    %20 = arith.mulf %19, %5 : vector<1x128xf32>
    %21 = arith.addf %17, %20 : vector<1x128xf32>
    %c3 = arith.constant 3 : index
    %22 = memref.load %arg3[%c3] : memref<8xf32, #tpu.memory_space<smem>>
    %23 = vector.broadcast %22 : f32 to vector<1x128xf32>
    %24 = arith.mulf %23, %7 : vector<1x128xf32>
    %25 = arith.addf %21, %24 : vector<1x128xf32>
    %c0_13 = arith.constant 0 : index
    %c0_14 = arith.constant 0 : index
    %c0_15 = arith.constant 0 : index
    %26 = vector.load %arg5[%c0_13, %c0_14, %c0_15] : memref<2x1x128xf32, #tpu.memory_space<vmem>>, vector<1x1x128xf32>
    %27 = vector.shape_cast %26 : vector<1x1x128xf32> to vector<1x128xf32>
    %28 = vector.shape_cast %25 : vector<1x128xf32> to vector<1x1x128xf32>
    tpu.vector_store %arg5[%c0_13, %c0_14, %c0_15], %28 {strides = array<i32>} : memref<2x1x128xf32, #tpu.memory_space<vmem>>, vector<1x1x128xf32>,
    %c1_16 = arith.constant 1 : index
    %29 = memref.load %arg4[%c1_16] : memref<2xf32, #tpu.memory_space<smem>>
    %30 = vector.broadcast %29 : f32 to vector<1x128xf32>
    %c4 = arith.constant 4 : index
    %31 = memref.load %arg3[%c4] : memref<8xf32, #tpu.memory_space<smem>>
    %32 = vector.broadcast %31 : f32 to vector<1x128xf32>
    %33 = arith.mulf %32, %1 : vector<1x128xf32>
    %34 = arith.addf %30, %33 : vector<1x128xf32>
    %c5 = arith.constant 5 : index
    %35 = memref.load %arg3[%c5] : memref<8xf32, #tpu.memory_space<smem>>
    %36 = vector.broadcast %35 : f32 to vector<1x128xf32>
    %37 = arith.mulf %36, %3 : vector<1x128xf32>
    %38 = arith.addf %34, %37 : vector<1x128xf32>
    %c6 = arith.constant 6 : index
    %39 = memref.load %arg3[%c6] : memref<8xf32, #tpu.memory_space<smem>>
    %40 = vector.broadcast %39 : f32 to vector<1x128xf32>
    %41 = arith.mulf %40, %5 : vector<1x128xf32>
    %42 = arith.addf %38, %41 : vector<1x128xf32>
    %c7 = arith.constant 7 : index
    %43 = memref.load %arg3[%c7] : memref<8xf32, #tpu.memory_space<smem>>
    %44 = vector.broadcast %43 : f32 to vector<1x128xf32>
    %45 = arith.mulf %44, %7 : vector<1x128xf32>
    %46 = arith.addf %42, %45 : vector<1x128xf32>
    %c1_17 = arith.constant 1 : index
    %c0_18 = arith.constant 0 : index
    %c0_19 = arith.constant 0 : index
    %47 = vector.load %arg5[%c1_17, %c0_18, %c0_19] : memref<2x1x128xf32, #tpu.memory_space<vmem>>, vector<1x1x128xf32>
    %48 = vector.shape_cast %47 : vector<1x1x128xf32> to vector<1x128xf32>
    %49 = vector.shape_cast %46 : vector<1x128xf32> to vector<1x1x128xf32>
    tpu.vector_store %arg5[%c1_17, %c0_18, %c0_19], %49 {strides = array<i32>} : memref<2x1x128xf32, #tpu.memory_space<vmem>>, vector<1x1x128xf32>,
    return
  }
  func.func @transform_0(%arg0: i32) -> (i32, i32, i32) {
    %c0_i32 = arith.constant 0 : i32
    %c0_i32_0 = arith.constant 0 : i32
    %c0_i32_1 = arith.constant 0 : i32
    return %c0_i32, %arg0, %c0_i32_0 : i32, i32, i32
  }
  func.func @transform_1(%arg0: i32) -> (i32, i32, i32) {
    %c0_i32 = arith.constant 0 : i32
    %c0_i32_0 = arith.constant 0 : i32
    %c0_i32_1 = arith.constant 0 : i32
    return %c0_i32, %arg0, %c0_i32_0 : i32, i32, i32
  }
  func.func @transform_2(%arg0: i32) -> i32 {
    %c0_i32 = arith.constant 0 : i32
    %c0_i32_0 = arith.constant 0 : i32
    return %c0_i32 : i32
  }
  func.func @transform_3(%arg0: i32) -> i32 {
    %c0_i32 = arith.constant 0 : i32
    %c0_i32_0 = arith.constant 0 : i32
    return %c0_i32 : i32
  }
  func.func @transform_4(%arg0: i32) -> (i32, i32, i32) {
    %c0_i32 = arith.constant 0 : i32
    %c0_i32_0 = arith.constant 0 : i32
    %c0_i32_1 = arith.constant 0 : i32
    return %c0_i32, %arg0, %c0_i32_0 : i32, i32, i32
  }
}

</mosaic_0001>

<llo_original>
// kernel: tpu_custom_call.1
$region0: #{tpu_custom_call.1}
  #allocation0 [shape = 'u32[]', space=smem, size = 0x4, offset = 0x4, fixed_abs, tag = 'smem constant byte address 0x4 - core index']
  #allocation1 [shape = 'u32[144,128]{1,0:T(1,128)}', space=vmem, size = 0x12000, scoped, tag = 'internal scratch']
  %s0 = inlined_call_operand.hbm [shape: f32[2,1,128], index: 0, kind: input, shape index: {}]
  %s1 = inlined_call_operand.hbm [shape: f32[2,1,128], index: 1, kind: input, shape index: {}]
  %s2 = inlined_call_operand.vmem [shape: f32[8], index: 2, kind: input, shape index: {}]
  %s3 = inlined_call_operand.vmem [shape: f32[2], index: 3, kind: input, shape index: {}]
  %s4 = inlined_call_operand.hbm [shape: f32[2,1,128], index: 4, kind: output, shape index: {}]
  %s5 = sld [smem:[#allocation0]]
  $region42: #{tpu_custom_call.1} parent=0
    _
  %s7 = ssub.s32 1, %s5
  %s8 = scalar_select 0, %s7, %s5
  $region1: #{tpu_custom_call.1} parent=0
    #allocation2 [shape = 'u8[1024]{0}', space=vmem, size = 0x400, scoped, tag = 'input window, operand 0, single buffered']
    #allocation3 [shape = 's32[1]{0}', space=sflag, size = 0x4, scoped, tag = 'scoped memory for tpu_custom_call.1']
    #allocation4 [shape = 's32[1]{0}', space=sflag, size = 0x4, scoped, tag = 'scoped memory for tpu_custom_call.1']
    #allocation5 [shape = 's32[1]{0}', space=sflag, size = 0x4, scoped, tag = 'scoped memory for tpu_custom_call.1']
    #allocation6 [shape = 'u8[1024]{0}', space=vmem, size = 0x400, scoped, tag = 'input window, operand 1, single buffered']
    #allocation7 [shape = 's32[1]{0}', space=sflag, size = 0x4, scoped, tag = 'scoped memory for tpu_custom_call.1']
    #allocation8 [shape = 'u8[512]{0}', space=smem, size = 0x200, scoped, tag = 'input window, operand 2, single buffered']
    #allocation9 [shape = 'u8[512]{0}', space=smem, size = 0x200, scoped, tag = 'input window, operand 3, single buffered']
    #allocation10 [shape = 's32[1]{0}', space=sflag, size = 0x4, scoped, tag = 'scoped memory for tpu_custom_call.1']
    #allocation11 [shape = 'u8[1024]{0}', space=vmem, size = 0x400, scoped, tag = 'output window, operand 0, single buffered']
    %9 = vsyncpa [#allocation3], 0
    %10 = vsyncpa [#allocation7], 0
    %11 = vsyncpa [#allocation5], 0
    %12 = vsyncpa [#allocation10], 0
    %13 = vsyncpa [#allocation4], 0
    // Predicated region
    $region2: #{tpu_custom_call.1} parent=1 // pred_check
      _
    $region3: #{tpu_custom_call.1} parent=1 // pred_check_branch
      %15 = sbr.rel (0) target = $region5
    $region4: #{tpu_custom_call.1} parent=1 // pred_region
      %s17 = ssub.s32 32, 32
      %18 = vsyncadd [#allocation3], %s17
      %s19 = sshll.u32 [#allocation2], 4
      %s20 = int_to_ptr.vmem [resolvable:$true] %s19
      %25 = dma.hbm_to_vmem [thread:$0]  %s0, 32, %s20, [#allocation3], 16, 16, 1
    $region5: #{tpu_custom_call.1} parent=1 // pred_fallthru
      _
    // Predicated region
    $region6: #{tpu_custom_call.1} parent=1 // pred_check
      _
    $region7: #{tpu_custom_call.1} parent=1 // pred_check_branch
      %27 = sbr.rel (0) target = $region9
    $region8: #{tpu_custom_call.1} parent=1 // pred_region
      %s29 = ssub.s32 32, 32
      %30 = vsyncadd [#allocation7], %s29
      %s31 = sshll.u32 [#allocation6], 4
      %s32 = int_to_ptr.vmem [resolvable:$true] %s31
      %37 = dma.hbm_to_vmem [thread:$0]  %s1, 32, %s32, [#allocation7], 16, 16, 1
    $region9: #{tpu_custom_call.1} parent=1 // pred_fallthru
      _
    // Predicated region
    $region10: #{tpu_custom_call.1} parent=1 // pred_check
      _
    $region11: #{tpu_custom_call.1} parent=1 // pred_check_branch
      %39 = sbr.rel (0) target = $region13
    $region12: #{tpu_custom_call.1} parent=1 // pred_region
      %s41 = ssub.s32 16, 16
      %42 = vsyncadd [#allocation5], %s41
      %s44 = sshll.u32 %s2, 4
      %s45 = int_to_ptr.vmem [resolvable:$true] %s44
      %47 = dma.vmem_to_smem %s45, 16, [#allocation8], [#allocation5]
    $region13: #{tpu_custom_call.1} parent=1 // pred_fallthru
      _
    // Predicated region
    $region14: #{tpu_custom_call.1} parent=1 // pred_check
      _
    $region15: #{tpu_custom_call.1} parent=1 // pred_check_branch
      %49 = sbr.rel (0) target = $region17
    $region16: #{tpu_custom_call.1} parent=1 // pred_region
      %s51 = ssub.s32 16, 16
      %52 = vsyncadd [#allocation10], %s51
      %s54 = sshll.u32 %s3, 4
      %s55 = int_to_ptr.vmem [resolvable:$true] %s54
      %57 = dma.vmem_to_smem %s55, 16, [#allocation9], [#allocation10]
    $region17: #{tpu_custom_call.1} parent=1 // pred_fallthru
      _
    // Predicated region
    $region18: #{tpu_custom_call.1} parent=1 // pred_check
      _
    $region19: #{tpu_custom_call.1} parent=1 // pred_check_branch
      %59 = sbr.rel (0) target = $region21
    $region20: #{tpu_custom_call.1} parent=1 // pred_region
      %60 = dma.done [#allocation3], 32
    $region21: #{tpu_custom_call.1} parent=1 // pred_fallthru
      _
    // Predicated region
    $region22: #{tpu_custom_call.1} parent=1 // pred_check
      _
    $region23: #{tpu_custom_call.1} parent=1 // pred_check_branch
      %62 = sbr.rel (0) target = $region25
    $region24: #{tpu_custom_call.1} parent=1 // pred_region
      %63 = dma.done [#allocation7], 32
    $region25: #{tpu_custom_call.1} parent=1 // pred_fallthru
      _
    // Predicated region
    $region26: #{tpu_custom_call.1} parent=1 // pred_check
      _
    $region27: #{tpu_custom_call.1} parent=1 // pred_check_branch
      %65 = sbr.rel (0) target = $region29
    $region28: #{tpu_custom_call.1} parent=1 // pred_region
      %66 = dma.done [#allocation5], 16
    $region29: #{tpu_custom_call.1} parent=1 // pred_fallthru
      _
    // Predicated region
    $region30: #{tpu_custom_call.1} parent=1 // pred_check
      _
    $region31: #{tpu_custom_call.1} parent=1 // pred_check_branch
      %68 = sbr.rel (0) target = $region33
    $region32: #{tpu_custom_call.1} parent=1 // pred_region
      %69 = dma.done [#allocation10], 16
    $region33: #{tpu_custom_call.1} parent=1 // pred_fallthru
      _
    %70 = sfence
    %v71 = vld [vmem:[#allocation2] sm:$0x1]
    %s72 = scalar_lea.vmem [#allocation2], 1
    %v73 = vld [vmem:[%s72] sm:$0x1]
    %v74 = vld [vmem:[#allocation6] sm:$0x1]
    %s75 = scalar_lea.vmem [#allocation6], 1
    %v76 = vld [vmem:[%s75] sm:$0x1]
    %s77 = sld [smem:[#allocation9]]
    %v78 = vstv %s77
    %s79 = sld [smem:[#allocation8]]
    %v80 = vstv %s79
    %v81 = vmul.f32 %v80, %v71
    %v82 = vadd.f32 %v78, %v81
    %s83 = sld [smem:[#allocation8 + $0x1]]
    %v84 = vstv %s83
    %v85 = vmul.f32 %v84, %v73
    %v86 = vadd.f32 %v82, %v85
    %s87 = sld [smem:[#allocation8 + $0x2]]
    %v88 = vstv %s87
    %v89 = vmul.f32 %v88, %v74
    %v90 = vadd.f32 %v86, %v89
    %s91 = sld [smem:[#allocation8 + $0x3]]
    %v92 = vstv %s91
    %v93 = vmul.f32 %v92, %v76
    %v94 = vadd.f32 %v90, %v93
    %95 = vst [vmem:[#allocation11] sm:$0x1] %v94
    %s96 = sld [smem:[#allocation9 + $0x1]]
    %v97 = vstv %s96
    %s98 = sld [smem:[#allocation8 + $0x4]]
    %v99 = vstv %s98
    %v100 = vmul.f32 %v99, %v71
    %v101 = vadd.f32 %v97, %v100
    %s102 = sld [smem:[#allocation8 + $0x5]]
    %v103 = vstv %s102
    %v104 = vmul.f32 %v103, %v73
    %v105 = vadd.f32 %v101, %v104
    %s106 = sld [smem:[#allocation8 + $0x6]]
    %v107 = vstv %s106
    %v108 = vmul.f32 %v107, %v74
    %v109 = vadd.f32 %v105, %v108
    %s110 = sld [smem:[#allocation8 + $0x7]]
    %v111 = vstv %s110
    %v112 = vmul.f32 %v111, %v76
    %v113 = vadd.f32 %v109, %v112
    %s114 = scalar_lea.vmem [#allocation11], 1
    %115 = vst [vmem:[%s114] sm:$0x1] %v113
    // Predicated region
    $region34: #{tpu_custom_call.1} parent=1 // pred_check
      _
    $region35: #{tpu_custom_call.1} parent=1 // pred_check_branch
      %117 = sbr.rel (0) target = $region37
    $region36: #{tpu_custom_call.1} parent=1 // pred_region
      %s119 = ssub.s32 32, 32
      %120 = vsyncadd [#allocation4], %s119
      %s121 = sshll.u32 [#allocation11], 4
      %s122 = int_to_ptr.vmem [resolvable:$true] %s121
      %127 = dma.vmem_to_hbm [thread:$0]  %s122, 32, %s4, [#allocation4], 16, 16, 1
    $region37: #{tpu_custom_call.1} parent=1 // pred_fallthru
      _
    // Predicated region
    $region38: #{tpu_custom_call.1} parent=1 // pred_check
      _
    $region39: #{tpu_custom_call.1} parent=1 // pred_check_branch
      %129 = sbr.rel (0) target = $region41
    $region40: #{tpu_custom_call.1} parent=1 // pred_region
      %130 = dma.done [#allocation4], 32
    $region41: #{tpu_custom_call.1} parent=1 // pred_fallthru
      _
    %131 = vsyncpa [#allocation3], 1
    %132 = vsyncpa [#allocation7], 1
    %133 = vsyncpa [#allocation4], 1
    %134 = vsyncpa [#allocation5], 1
    %135 = vsyncpa [#allocation10], 1

</llo_original>
